<compile_context>
chip_gen: v5e
topology: v5e:2x2
jax: 0.10.0
libtpu: 0.0.40
codegen_flags: <defaults>
</compile_context>

<pallas_src>
import functools

import jax
import jax.numpy as jnp
from jax.experimental import pallas as pl
from jax.experimental.pallas import tpu as pltpu


def _round_up(x, m):
    return ((x + m - 1) // m) * m


def _actor_normal_kernel(x_ref, p_ref, out_ref, *, n_states, n_actions,
                         hp, ap, r2, r3, rb):
    """Fused fc1->relu->fc2->relu->[fc3|fc4]->(tanh | softplus+clip)."""
    x = x_ref[...]

    # Static ref slices out of the packed, lane-padded param slab (no full
    # slab load; padding rows/cols are zero so they contribute nothing).
    w1 = p_ref[0:n_states, 0:hp]          # (n_states, hp)
    w2 = p_ref[r2:r2 + hp, 0:hp]          # (hp, hp)
    wh = p_ref[r3:r3 + hp, 0:ap]          # (hp, ap)  = [w3 | w4 | 0...]
    b1 = p_ref[rb:rb + 1, 0:hp]
    b2 = p_ref[rb + 1:rb + 2, 0:hp]
    bh = p_ref[rb + 2:rb + 3, 0:ap]

    h1 = jnp.maximum(jnp.dot(x, w1, preferred_element_type=jnp.float32) + b1, 0.0)
    h2 = jnp.maximum(jnp.dot(h1, w2, preferred_element_type=jnp.float32) + b2, 0.0)
    head = jnp.dot(h2, wh, preferred_element_type=jnp.float32) + bh   # (B, ap)

    # Both activations on the full lane-dense head (same vreg count as the old
    # narrow slices), then one lane-index select and one unmasked store.
    mu = jnp.tanh(head)
    softplus = jnp.maximum(head, 0.0) + jnp.log1p(jnp.exp(-jnp.abs(head)))
    sigma = jnp.clip(softplus + 0.001, -0.25, 0.25)

    lane = jax.lax.broadcasted_iota(jnp.int32, head.shape, 1)
    out_ref[...] = jnp.where(lane < n_actions, mu, sigma)


def pack_params(params, n_states, hidden, n_actions):
    """Pack all 8 tensors into one sublane-aligned, lane-padded f32 slab.

    Row layout (section starts are multiples of 8 sublanes):
      [0,        n_states)  : w1        in cols 0:hidden
      [r2,       r2+hidden) : w2        in cols 0:hidden
      [r3,       r3+hidden) : [w3|w4]   in cols 0:2*n_actions
      [rb, rb+3)            : b1, b2, [b3|b4]  (one bias per row)
    All other entries are zero, so hp/ap-wide contractions are exact.
    """
    hp = _round_up(hidden, 128)
    ap = _round_up(2 * n_actions, 128)
    sp = _round_up(n_states, 8)
    cols = max(hp, ap)
    r2 = sp
    r3 = sp + hp
    rb = sp + 2 * hp
    rows = rb + 8

    wh = jnp.concatenate([params["w3"], params["w4"]], axis=1)   # (hidden, 2A)
    bh = jnp.concatenate([params["b3"], params["b4"]], axis=1)   # (1, 2A)

    slab = jnp.zeros((rows, cols), jnp.float32)
    slab = slab.at[0:n_states, 0:hidden].set(params["w1"])
    slab = slab.at[r2:r2 + hidden, 0:hidden].set(params["w2"])
    slab = slab.at[r3:r3 + hidden, 0:2 * n_actions].set(wh)
    slab = slab.at[rb, 0:hidden].set(params["b1"][0])
    slab = slab.at[rb + 1, 0:hidden].set(params["b2"][0])
    slab = slab.at[rb + 2, 0:2 * n_actions].set(bh[0])

    meta = {"hp": hp, "ap": ap, "r2": r2, "r3": r3, "rb": rb}
    return slab, meta


def actor_normal_forward(x, slab, meta, *, n_states, n_actions, tile_b=2048):
    """x: (B, n_states) f32; slab/meta from pack_params. Returns (mu, sigma)."""
    B = x.shape[0]
    hp, ap = meta["hp"], meta["ap"]
    kernel = functools.partial(
        _actor_normal_kernel, n_states=n_states, n_actions=n_actions,
        hp=hp, ap=ap, r2=meta["r2"], r3=meta["r3"], rb=meta["rb"])

    if B > tile_b:
        # Batch-tiled, pipelined path.  Pad B up to a tile multiple so there is
        # never an un-pipelined whole-array fallback for large/odd batches.
        Bp = _round_up(B, tile_b)
        xp = x if Bp == B else jnp.pad(x, ((0, Bp - B), (0, 0)))

        # Explicit scoped-VMEM budget: double-buffered x/out tiles (last dim
        # pads to 128 lanes in VMEM) + the resident param slab + headroom.
        x_tile_bytes = tile_b * _round_up(n_states, 128) * 4
        out_tile_bytes = tile_b * ap * 4
        slab_bytes = int(slab.shape[0]) * int(slab.shape[1]) * 4
        vmem_limit = min(
            2 * (x_tile_bytes + out_tile_bytes) + 2 * slab_bytes + (4 << 20),
            48 << 20)

        out = pl.pallas_call(
            kernel,
            out_shape=jax.ShapeDtypeStruct((Bp, ap), jnp.float32),
            grid=(Bp // tile_b,),
            in_specs=[
                pl.BlockSpec((tile_b, n_states), lambda i: (i, 0)),
                pl.BlockSpec(slab.shape, lambda i: (0, 0)),   # VMEM-resident
            ],
            out_specs=pl.BlockSpec((tile_b, ap), lambda i: (i, 0)),
            compiler_params=pltpu.CompilerParams(
                dimension_semantics=("parallel",),
                vmem_limit_bytes=vmem_limit),
        )(xp, slab)
    else:
        # Tiny/medium batch: pad to a sublane multiple, whole-array VMEM
        # blocks, no grid machinery.
        Bp = _round_up(max(B, 8), 8)
        xp = x if Bp == B else jnp.pad(x, ((0, Bp - B), (0, 0)))
        out = pl.pallas_call(
            kernel,
            out_shape=jax.ShapeDtypeStruct((Bp, ap), jnp.float32),
            in_specs=[
                pl.BlockSpec(memory_space=pltpu.MemorySpace.VMEM),
                pl.BlockSpec(memory_space=pltpu.MemorySpace.VMEM),
            ],
            out_specs=pl.BlockSpec(memory_space=pltpu.MemorySpace.VMEM),
        )(xp, slab)

    mu = out[:B, :n_actions]
    sigma = out[:B, n_actions:2 * n_actions]
    return mu, sigma


def init_params(key, n_states, n_actions, hidden_dim):
    """Deterministic synthetic init. Weights stored as (in, out) = W^T of nn.Linear."""
    ks = jax.random.split(key, 8)

    def linear(kw, kb, fan_in, fan_out):
        bound = 1.0 / jnp.sqrt(fan_in)
        w = jax.random.uniform(kw, (fan_in, fan_out), jnp.float32, -bound, bound)
        b = jax.random.uniform(kb, (1, fan_out), jnp.float32, -bound, bound)
        return w, b

    w1, b1 = linear(ks[0], ks[1], n_states, hidden_dim)
    w2, b2 = linear(ks[2], ks[3], hidden_dim, hidden_dim)
    w3, b3 = linear(ks[4], ks[5], hidden_dim, n_actions)
    w4, b4 = linear(ks[6], ks[7], hidden_dim, n_actions)
    return {"w1": w1, "b1": b1, "w2": w2, "b2": b2,
            "w3": w3, "b3": b3, "w4": w4, "b4": b4}


def reference_forward(x, p):
    """Pure-JAX reference matching the PyTorch module semantics."""
    h1 = jax.nn.relu(x @ p["w1"] + p["b1"])
    h2 = jax.nn.relu(h1 @ p["w2"] + p["b2"])
    mu = jnp.tanh(h2 @ p["w3"] + p["b3"])
    sigma = jax.nn.softplus(h2 @ p["w4"] + p["b4"]) + 0.001
    sigma = jnp.clip(sigma, -0.25, 0.25)
    return mu, sigma


if __name__ == "__main__":
    n_states, n_actions, hidden_dim = 8, 4, 32
    batch = 2

    key = jax.random.PRNGKey(0)
    k_x, k_p, k_x2 = jax.random.split(key, 3)

    params = init_params(k_p, n_states, n_actions, hidden_dim)
    slab, meta = pack_params(params, n_states, hidden_dim, n_actions)

    # Tiny-batch (no-grid) path.
    x = jax.random.normal(k_x, (batch, n_states), jnp.float32)
    mu, sigma = actor_normal_forward(x, slab, meta,
                                     n_states=n_states, n_actions=n_actions)
    jax.block_until_ready((mu, sigma))
    mu_ref, sigma_ref = reference_forward(x, params)
    assert jnp.allclose(mu, mu_ref, atol=1e-5, rtol=1e-5), "mu mismatch (tiny)"
    assert jnp.allclose(sigma, sigma_ref, atol=1e-5, rtol=1e-5), "sigma mismatch (tiny)"

    # Batch-tiled (grid) path with a batch that is NOT a tile multiple, to
    # exercise the padded pipelined path (small tile_b keeps shapes tiny).
    x2 = jax.random.normal(k_x2, (300, n_states), jnp.float32)
    mu2, sigma2 = actor_normal_forward(x2, slab, meta,
                                       n_states=n_states, n_actions=n_actions,
                                       tile_b=128)
    jax.block_until_ready((mu2, sigma2))
    mu2_ref, sigma2_ref = reference_forward(x2, params)
    assert jnp.allclose(mu2, mu2_ref, atol=1e-5, rtol=1e-5), "mu mismatch (tiled)"
    assert jnp.allclose(sigma2, sigma2_ref, atol=1e-5, rtol=1e-5), "sigma mismatch (tiled)"

    print("KERNEL_OK")
</pallas_src>

<mosaic_0001>
module attributes {stable_mosaic.version = 11 : i64} {
  func.func @_actor_normal_kernel(%arg0: memref<8x8xf32, #tpu.memory_space<vmem>>, %arg1: memref<272x128xf32, #tpu.memory_space<vmem>>, %arg2: memref<8x128xf32, #tpu.memory_space<vmem>>) attributes {dimension_semantics = [], scalar_prefetch = 0 : i64, scratch_operands = 0 : i64, tpu.core_type = #tpu.core_type<tc>} {
    %c0 = arith.constant 0 : index
    %c0_0 = arith.constant 0 : index
    %0 = vector.load %arg0[%c0, %c0_0] : memref<8x8xf32, #tpu.memory_space<vmem>>, vector<8x8xf32>
    %c0_1 = arith.constant 0 : index
    %c0_2 = arith.constant 0 : index
    %1 = vector.load %arg1[%c0_1, %c0_2] : memref<272x128xf32, #tpu.memory_space<vmem>>, vector<8x128xf32>
    %c8 = arith.constant 8 : index
    %c0_3 = arith.constant 0 : index
    %2 = vector.load %arg1[%c8, %c0_3] : memref<272x128xf32, #tpu.memory_space<vmem>>, vector<128x128xf32>
    %c136 = arith.constant 136 : index
    %c0_4 = arith.constant 0 : index
    %3 = vector.load %arg1[%c136, %c0_4] : memref<272x128xf32, #tpu.memory_space<vmem>>, vector<128x128xf32>
    %c264 = arith.constant 264 : index
    %c0_5 = arith.constant 0 : index
    %4 = vector.load %arg1[%c264, %c0_5] : memref<272x128xf32, #tpu.memory_space<vmem>>, vector<1x128xf32>
    %c265 = arith.constant 265 : index
    %c0_6 = arith.constant 0 : index
    %5 = vector.load %arg1[%c265, %c0_6] : memref<272x128xf32, #tpu.memory_space<vmem>>, vector<1x128xf32>
    %c266 = arith.constant 266 : index
    %c0_7 = arith.constant 0 : index
    %6 = vector.load %arg1[%c266, %c0_7] : memref<272x128xf32, #tpu.memory_space<vmem>>, vector<1x128xf32>
    %cst = arith.constant dense<0.000000e+00> : vector<8x128xf32>
    %7 = tpu.matmul %0, %1, %cst {dimension_numbers = #tpu.dot_dimension_numbers<[1], [0], [0], [1], [0, 0, 1, 1], [], []>} : vector<8x8xf32>, vector<8x128xf32>, vector<8x128xf32> -> vector<8x128xf32>
    %8 = vector.broadcast %4 : vector<1x128xf32> to vector<8x128xf32>
    %9 = arith.addf %7, %8 : vector<8x128xf32>
    %cst_8 = arith.constant 0.000000e+00 : f32
    %10 = vector.broadcast %cst_8 : f32 to vector<8x128xf32>
    %11 = arith.maximumf %9, %10 : vector<8x128xf32>
    %cst_9 = arith.constant dense<0.000000e+00> : vector<8x128xf32>
    %12 = tpu.matmul %11, %2, %cst_9 {dimension_numbers = #tpu.dot_dimension_numbers<[1], [0], [0], [1], [0, 0, 1, 1], [], []>} : vector<8x128xf32>, vector<128x128xf32>, vector<8x128xf32> -> vector<8x128xf32>
    %13 = vector.broadcast %5 : vector<1x128xf32> to vector<8x128xf32>
    %14 = arith.addf %12, %13 : vector<8x128xf32>
    %cst_10 = arith.constant 0.000000e+00 : f32
    %15 = vector.broadcast %cst_10 : f32 to vector<8x128xf32>
    %16 = arith.maximumf %14, %15 : vector<8x128xf32>
    %cst_11 = arith.constant dense<0.000000e+00> : vector<8x128xf32>
    %17 = tpu.matmul %16, %3, %cst_11 {dimension_numbers = #tpu.dot_dimension_numbers<[1], [0], [0], [1], [0, 0, 1, 1], [], []>} : vector<8x128xf32>, vector<128x128xf32>, vector<8x128xf32> -> vector<8x128xf32>
    %18 = vector.broadcast %6 : vector<1x128xf32> to vector<8x128xf32>
    %19 = arith.addf %17, %18 : vector<8x128xf32>
    %20 = math.tanh %19 : vector<8x128xf32>
    %cst_12 = arith.constant 0.000000e+00 : f32
    %21 = vector.broadcast %cst_12 : f32 to vector<8x128xf32>
    %22 = arith.maximumf %19, %21 : vector<8x128xf32>
    %23 = math.absf %19 : vector<8x128xf32>
    %cst_13 = arith.constant 0.000000e+00 : f32
    %24 = vector.broadcast %cst_13 : f32 to vector<8x128xf32>
    %25 = arith.subf %24, %23 : vector<8x128xf32>
    %26 = math.exp %25 : vector<8x128xf32>
    %27 = math.log1p %26 : vector<8x128xf32>
    %28 = arith.addf %22, %27 : vector<8x128xf32>
    %cst_14 = arith.constant 1.000000e-03 : f32
    %29 = vector.broadcast %cst_14 : f32 to vector<8x128xf32>
    %30 = arith.addf %28, %29 : vector<8x128xf32>
    %cst_15 = arith.constant -2.500000e-01 : f32
    %cst_16 = arith.constant 2.500000e-01 : f32
    %31 = vector.broadcast %cst_15 : f32 to vector<8x128xf32>
    %32 = arith.maximumf %31, %30 : vector<8x128xf32>
    %33 = vector.broadcast %cst_16 : f32 to vector<8x128xf32>
    %34 = arith.minimumf %33, %32 : vector<8x128xf32>
    %35 = tpu.iota {dimensions = array<i32: 1>} : vector<8x128xi32>
    %c4_i32 = arith.constant 4 : i32
    %36 = vector.broadcast %c4_i32 : i32 to vector<8x128xi32>
    %37 = arith.cmpi slt, %35, %36 : vector<8x128xi32>
    %38 = arith.select %37, %20, %34 : vector<8x128xi1>, vector<8x128xf32>
    %c0_17 = arith.constant 0 : index
    %c0_18 = arith.constant 0 : index
    %39 = vector.load %arg2[%c0_17, %c0_18] : memref<8x128xf32, #tpu.memory_space<vmem>>, vector<8x128xf32>
    tpu.vector_store %arg2[%c0_17, %c0_18], %38 {strides = array<i32>} : memref<8x128xf32, #tpu.memory_space<vmem>>, vector<8x128xf32>,
    return
  }
}

</mosaic_0001>

<llo_original>
// kernel: tpu_custom_call.1
$region0: #{tpu_custom_call.1}
  #allocation0 [shape = 'u32[]', space=smem, size = 0x4, offset = 0x4, fixed_abs, tag = 'smem constant byte address 0x4 - core index']
  #allocation1 [shape = 'u32[72,128]{1,0:T(1,128)}', space=vmem, size = 0x9000, scoped, tag = 'internal scratch']
  %s0 = inlined_call_operand.hbm [shape: f32[8,8], index: 0, kind: input, shape index: {}]
  %s1 = inlined_call_operand.hbm [shape: f32[272,128], index: 1, kind: input, shape index: {}]
  %s2 = inlined_call_operand.hbm [shape: f32[8,128], index: 2, kind: output, shape index: {}]
  %s3 = sld [smem:[#allocation0]]
  $region26: #{tpu_custom_call.1} parent=0
    _
  %s5 = ssub.s32 1, %s3
  %s6 = scalar_select 0, %s5, %s3
  $region1: #{tpu_custom_call.1} parent=0
    #allocation2 [shape = 'u8[4096]{0}', space=vmem, size = 0x1000, scoped, tag = 'input window, operand 0, single buffered']
    #allocation3 [shape = 's32[1]{0}', space=sflag, size = 0x4, scoped, tag = 'scoped memory for tpu_custom_call.1']
    #allocation4 [shape = 's32[1]{0}', space=sflag, size = 0x4, scoped, tag = 'scoped memory for tpu_custom_call.1']
    #allocation5 [shape = 'u8[139264]{0}', space=vmem, size = 0x22000, scoped, tag = 'input window, operand 1, single buffered']
    #allocation6 [shape = 's32[1]{0}', space=sflag, size = 0x4, scoped, tag = 'scoped memory for tpu_custom_call.1']
    #allocation7 [shape = 'u8[4096]{0}', space=vmem, size = 0x1000, scoped, tag = 'output window, operand 0, single buffered']
    %7 = vsyncpa [#allocation3], 0
    %8 = vsyncpa [#allocation6], 0
    %9 = vsyncpa [#allocation4], 0
    // Predicated region
    $region2: #{tpu_custom_call.1} parent=1 // pred_check
      _
    $region3: #{tpu_custom_call.1} parent=1 // pred_check_branch
      %11 = sbr.rel (0) target = $region5
    $region4: #{tpu_custom_call.1} parent=1 // pred_region
      %13 = vsyncadd [#allocation3], 0
      %s15 = sshll.u32 %s0, 4
      %s16 = int_to_ptr.hbm [resolvable:$true] %s15
      %s17 = sshll.u32 [#allocation2], 4
      %s18 = int_to_ptr.vmem [resolvable:$true] %s17
      %20 = dma.hbm_to_vmem [thread:$0]  %s16, 128, %s18, [#allocation3]
    $region5: #{tpu_custom_call.1} parent=1 // pred_fallthru
      _
    // Predicated region
    $region6: #{tpu_custom_call.1} parent=1 // pred_check
      _
    $region7: #{tpu_custom_call.1} parent=1 // pred_check_branch
      %22 = sbr.rel (0) target = $region9
    $region8: #{tpu_custom_call.1} parent=1 // pred_region
      %24 = vsyncadd [#allocation6], 0
      %s25 = sshll.u32 %s1, 4
      %s26 = int_to_ptr.hbm [resolvable:$true] %s25
      %s27 = sshll.u32 [#allocation5], 4
      %s28 = int_to_ptr.vmem [resolvable:$true] %s27
      %33 = dma.hbm_to_vmem [thread:$0]  %s26, 4352, %s28, [#allocation6], 128, 128, 8
    $region9: #{tpu_custom_call.1} parent=1 // pred_fallthru
      _
    // Predicated region
    $region10: #{tpu_custom_call.1} parent=1 // pred_check
      _
    $region11: #{tpu_custom_call.1} parent=1 // pred_check_branch
      %35 = sbr.rel (0) target = $region13
    $region12: #{tpu_custom_call.1} parent=1 // pred_region
      %37 = dma.done [#allocation3], 128
    $region13: #{tpu_custom_call.1} parent=1 // pred_fallthru
      _
    // Predicated region
    $region14: #{tpu_custom_call.1} parent=1 // pred_check
      _
    $region15: #{tpu_custom_call.1} parent=1 // pred_check_branch
      %39 = sbr.rel (0) target = $region17
    $region16: #{tpu_custom_call.1} parent=1 // pred_region
      %41 = dma.done [#allocation6], 4352
    $region17: #{tpu_custom_call.1} parent=1 // pred_fallthru
      _
    %v42 = vld [vmem:[#allocation2] sm:$0xff]
    %v43 = vld [vmem:[#allocation5] sm:$0xff]
    %v44 = vld [vmem:[#allocation5 + $0x8] sm:$0xff]
    %v45 = vld [vmem:[#allocation5 + $0x10] sm:$0xff]
    %v46 = vld [vmem:[#allocation5 + $0x18] sm:$0xff]
    %v47 = vld [vmem:[#allocation5 + $0x20] sm:$0xff]
    %v48 = vld [vmem:[#allocation5 + $0x28] sm:$0xff]
    %v49 = vld [vmem:[#allocation5 + $0x30] sm:$0xff]
    %v50 = vld [vmem:[#allocation5 + $0x38] sm:$0xff]
    %v51 = vld [vmem:[#allocation5 + $0x40] sm:$0xff]
    %v52 = vld [vmem:[#allocation5 + $0x48] sm:$0xff]
    %v53 = vld [vmem:[#allocation5 + $0x50] sm:$0xff]
    %v54 = vld [vmem:[#allocation5 + $0x58] sm:$0xff]
    %v55 = vld [vmem:[#allocation5 + $0x60] sm:$0xff]
    %v56 = vld [vmem:[#allocation5 + $0x68] sm:$0xff]
    %v57 = vld [vmem:[#allocation5 + $0x70] sm:$0xff]
    %v58 = vld [vmem:[#allocation5 + $0x78] sm:$0xff]
    %v59 = vld [vmem:[#allocation5 + $0x80] sm:$0xff]
    %v60 = vld [vmem:[#allocation5 + $0x88] sm:$0xff]
    %v61 = vld [vmem:[#allocation5 + $0x90] sm:$0xff]
    %v62 = vld [vmem:[#allocation5 + $0x98] sm:$0xff]
    %v63 = vld [vmem:[#allocation5 + $0xa0] sm:$0xff]
    %v64 = vld [vmem:[#allocation5 + $0xa8] sm:$0xff]
    %v65 = vld [vmem:[#allocation5 + $0xb0] sm:$0xff]
    %v66 = vld [vmem:[#allocation5 + $0xb8] sm:$0xff]
    %v67 = vld [vmem:[#allocation5 + $0xc0] sm:$0xff]
    %v68 = vld [vmem:[#allocation5 + $0xc8] sm:$0xff]
    %v69 = vld [vmem:[#allocation5 + $0xd0] sm:$0xff]
    %v70 = vld [vmem:[#allocation5 + $0xd8] sm:$0xff]
    %v71 = vld [vmem:[#allocation5 + $0xe0] sm:$0xff]
    %v72 = vld [vmem:[#allocation5 + $0xe8] sm:$0xff]
    %v73 = vld [vmem:[#allocation5 + $0xf0] sm:$0xff]
    %v74 = vld [vmem:[#allocation5 + $0xf8] sm:$0xff]
    %v75 = vld [vmem:[#allocation5 + $0x100] sm:$0xff]
    %v76 = vld [vmem:[#allocation5 + $0x108] sm:$0x1]
    %v77 = vld [vmem:[#allocation5 + $0x109] sm:$0x1]
    %v78 = vld [vmem:[#allocation5 + $0x10a] sm:$0x1]
    %v79 = vperm.slane %v76, 0
    %vm80 = vcmask 64512
    %v82 = vsel %vm80, %v42, 0
    %84 = vmatpush.msra.mxu0 0.0
    %85 = vmatpush.msra.mxu0 0.0
    %86 = vmatpush.msra.mxu0 0.0
    %87 = vmatpush.msra.mxu0 0.0
    %88 = vmatpush.msra.mxu0 0.0
    %89 = vmatpush.msra.mxu0 0.0
    %90 = vmatpush.msra.mxu0 0.0
    %91 = vmatpush.msra.mxu0 0.0
    %92 = vmatpush.msra.mxu0 0.0
    %93 = vmatpush.msra.mxu0 0.0
    %94 = vmatpush.msra.mxu0 0.0
    %95 = vmatpush.msra.mxu0 0.0
    %96 = vmatpush.msra.mxu0 0.0
    %97 = vmatpush.msra.mxu0 0.0
    %98 = vmatpush.msra.mxu0 0.0
    %99 = vmatpush.msra.mxu0 %v43
    %100 = vmatmul.f32.gmra.mxu0 %v82
    %v101 = vpop.f32.mrf.mxu0
    %v102 = vadd.f32 %v79, %v101
    %103 = vdwg.mxu0
    %v104 = vmax.f32 %v102, 0.0
    %v105 = vperm.slane %v77, 0
    %106 = vmatpush.msra.mxu0 %v59
    %107 = vmatpush.msra.mxu0 %v58
    %108 = vmatpush.msra.mxu0 %v57
    %109 = vmatpush.msra.mxu0 %v56
    %110 = vmatpush.msra.mxu0 %v55
    %111 = vmatpush.msra.mxu0 %v54
    %112 = vmatpush.msra.mxu0 %v53
    %113 = vmatpush.msra.mxu0 %v52
    %114 = vmatpush.msra.mxu0 %v51
    %115 = vmatpush.msra.mxu0 %v50
    %116 = vmatpush.msra.mxu0 %v49
    %117 = vmatpush.msra.mxu0 %v48
    %118 = vmatpush.msra.mxu0 %v47
    %119 = vmatpush.msra.mxu0 %v46
    %120 = vmatpush.msra.mxu0 %v45
    %121 = vmatpush.msra.mxu0 %v44
    %122 = vmatmul.f32.gmra.mxu0 %v104
    %v123 = vpop.f32.mrf.mxu0
    %v124 = vadd.f32 %v105, %v123
    %125 = vdwg.mxu0
    %v126 = vmax.f32 %v124, 0.0
    %v127 = vperm.slane %v78, 0
    %128 = vmatpush.msra.mxu0 %v75
    %129 = vmatpush.msra.mxu0 %v74
    %130 = vmatpush.msra.mxu0 %v73
    %131 = vmatpush.msra.mxu0 %v72
    %132 = vmatpush.msra.mxu0 %v71
    %133 = vmatpush.msra.mxu0 %v70
    %134 = vmatpush.msra.mxu0 %v69
    %135 = vmatpush.msra.mxu0 %v68
    %136 = vmatpush.msra.mxu0 %v67
    %137 = vmatpush.msra.mxu0 %v66
    %138 = vmatpush.msra.mxu0 %v65
    %139 = vmatpush.msra.mxu0 %v64
    %140 = vmatpush.msra.mxu0 %v63
    %141 = vmatpush.msra.mxu0 %v62
    %142 = vmatpush.msra.mxu0 %v61
    %143 = vmatpush.msra.mxu0 %v60
    %144 = vmatmul.f32.gmra.mxu0 %v126
    %v145 = vpop.f32.mrf.mxu0
    %v146 = vadd.f32 %v127, %v145
    %147 = vdwg.mxu0
    %v148 = vtanh.pop %v146
    %v149 = vmax.f32 %v146, 0.0
    %v150 = vand.u32 2147483647, %v146
    %v151 = vsub.f32 0.0, %v150
    %v152 = vmul.f32 %v151, 1.442695
    %v153 = vpow.pop %v152
    %v154 = vadd.f32 %v153, 1.0
    %v155 = vlog2.pop %v154
    %v156 = vmul.f32 %v155, 0.6931472
    %v157 = vmul.f32 -0.5, %v153
    %v158 = vadd.f32 %v157, 1.0
    %v159 = vmul.f32 %v158, %v153
    %v160 = vand.u32 2147483647, %v153
    %vm161 = vcmp.lt.f32.partialorder %v160, 0.0004427343
    %v162 = vsel %vm161, %v159, %v156
    %v163 = vadd.f32 %v149, %v162
    %v164 = vadd.f32 %v163, 0.001
    %v165 = vmax.f32 %v164, -0.25
    %v166 = vmin.f32 %v165, 0.25
    %v167 = vlaneseq
    %v168 = vand.u32 %v167, 127
    %vm169 = vcmp.lt.s32.totalorder %v168, 4
    %v170 = vsel %vm169, %v148, %v166
    %171 = vst [vmem:[#allocation7] sm:$0xff] %v170
    // Predicated region
    $region18: #{tpu_custom_call.1} parent=1 // pred_check
      _
    $region19: #{tpu_custom_call.1} parent=1 // pred_check_branch
      %173 = sbr.rel (0) target = $region21
    $region20: #{tpu_custom_call.1} parent=1 // pred_region
      %175 = vsyncadd [#allocation4], 0
      %s177 = sshll.u32 [#allocation7], 4
      %s178 = int_to_ptr.vmem [resolvable:$true] %s177
      %s179 = sshll.u32 %s2, 4
      %s180 = int_to_ptr.hbm [resolvable:$true] %s179
      %182 = dma.vmem_to_hbm [thread:$0]  %s178, 128, %s180, [#allocation4]
    $region21: #{tpu_custom_call.1} parent=1 // pred_fallthru
      _
    // Predicated region
    $region22: #{tpu_custom_call.1} parent=1 // pred_check
      _
    $region23: #{tpu_custom_call.1} parent=1 // pred_check_branch
      %184 = sbr.rel (0) target = $region25
    $region24: #{tpu_custom_call.1} parent=1 // pred_region
      %186 = dma.done [#allocation4], 128
    $region25: #{tpu_custom_call.1} parent=1 // pred_fallthru
      _
    %187 = vsyncpa [#allocation3], 1
    %188 = vsyncpa [#allocation6], 1
    %189 = vsyncpa [#allocation4], 1

</llo_original>
